<compile_context>
chip_gen: v7x
topology: tpu7x:2x2x1
jax: 0.10.0
libtpu: 0.0.40
codegen_flags: <defaults>
</compile_context>

<pallas_src>
import jax
import jax.numpy as jnp
from jax.experimental import pallas as pl
from jax.experimental.pallas import tpu as pltpu


def _round_up(x, m):
    return ((x + m - 1) // m) * m


def perceptron_kernel(x_ref, w1_ref, b1_ref, w2_ref, b2_ref, o_ref):
    # One batch tile per grid step: two MXU matmuls + f32 bias/ReLU epilogue.
    w1 = w1_ref[...]
    w2 = w2_ref[...]
    x = x_ref[...].astype(w1.dtype)                       # match MXU input dtype
    h = jnp.dot(x, w1, preferred_element_type=jnp.float32)
    h = jnp.maximum(h + b1_ref[...], 0.0)                 # f32 epilogue (bias+ReLU)
    y = jnp.dot(h.astype(w2.dtype), w2, preferred_element_type=jnp.float32)
    o_ref[...] = (y + b2_ref[...]).astype(o_ref.dtype)


def perceptron_forward(x, w1p, b1p, w2p, b2p, action_size, *, batch_tile=512):
    """Forward pass.

    x:    [B, obs]            (logical, un-padded)
    w1p:  [OBS_P, HID_P]      lane-padded (zeros), from init_params
    b1p:  [1, HID_P]
    w2p:  [HID_P, ACT_P]
    b2p:  [1, ACT_P]
    returns [B, action_size] f32.
    """
    B, obs = x.shape
    OBS_P, HID_P = w1p.shape
    ACT_P = w2p.shape[1]

    # Batch tiling: TB multiple of 8 (sublane), capped by batch_tile; pad B up.
    TB = min(batch_tile, _round_up(B, 8))
    B_P = _round_up(B, TB)

    # Pad activations to the lane-dense / tile-aligned layout (zeros).
    xp = jnp.zeros((B_P, OBS_P), x.dtype).at[:B, :obs].set(x)

    grid = (B_P // TB,)

    itemsize = jnp.dtype(jnp.float32).itemsize
    cost = pl.CostEstimate(
        flops=2 * B_P * (OBS_P * HID_P + HID_P * ACT_P),
        transcendentals=0,
        bytes_accessed=(xp.size + w1p.size + b1p.size + w2p.size + b2p.size
                        + B_P * ACT_P) * itemsize,
    )

    out_p = pl.pallas_call(
        perceptron_kernel,
        out_shape=jax.ShapeDtypeStruct((B_P, ACT_P), jnp.float32),
        grid=grid,
        in_specs=[
            pl.BlockSpec((TB, OBS_P), lambda i: (i, 0)),      # activations: tiled over batch
            pl.BlockSpec((OBS_P, HID_P), lambda i: (0, 0)),   # weights: VMEM-resident
            pl.BlockSpec((1, HID_P), lambda i: (0, 0)),
            pl.BlockSpec((HID_P, ACT_P), lambda i: (0, 0)),
            pl.BlockSpec((1, ACT_P), lambda i: (0, 0)),
        ],
        out_specs=pl.BlockSpec((TB, ACT_P), lambda i: (i, 0)),  # lane-dense output
        compiler_params=pltpu.CompilerParams(
            # Batch tiles are independent -> shard across both TCs on v7x.
            dimension_semantics=("parallel",),
            # NOTE: when scaling hidden/obs up, budget tiles against v7x's
            # 64 MiB physical VMEM and set vmem_limit_bytes explicitly.
        ),
        cost_estimate=cost,
    )(xp, w1p, b1p, w2p, b2p)

    return out_p[:B, :action_size]


def init_params(key, obs_size, hidden_dim, action_size, dtype=jnp.float32):
    """PyTorch-style nn.Linear init, stored transposed ([in, out]) and
    zero-padded ONCE to lane-dense (multiples of 128) shapes."""
    OBS_P = _round_up(obs_size, 128)
    HID_P = _round_up(hidden_dim, 128)
    ACT_P = _round_up(action_size, 128)

    k1, k2, k3, k4 = jax.random.split(key, 4)
    bound1 = 1.0 / jnp.sqrt(obs_size)
    bound2 = 1.0 / jnp.sqrt(hidden_dim)
    w1 = jax.random.uniform(k1, (obs_size, hidden_dim), jnp.float32, -bound1, bound1)
    b1 = jax.random.uniform(k2, (1, hidden_dim), jnp.float32, -bound1, bound1)
    w2 = jax.random.uniform(k3, (hidden_dim, action_size), jnp.float32, -bound2, bound2)
    b2 = jax.random.uniform(k4, (1, action_size), jnp.float32, -bound2, bound2)

    # Zero-pad once at init (padded lanes contribute exactly 0 to the output).
    w1p = jnp.zeros((OBS_P, HID_P), dtype).at[:obs_size, :hidden_dim].set(w1.astype(dtype))
    b1p = jnp.zeros((1, HID_P), jnp.float32).at[:, :hidden_dim].set(b1)
    w2p = jnp.zeros((HID_P, ACT_P), dtype).at[:hidden_dim, :action_size].set(w2.astype(dtype))
    b2p = jnp.zeros((1, ACT_P), jnp.float32).at[:, :action_size].set(b2)
    # Keep un-padded copies for the reference check.
    return (w1p, b1p, w2p, b2p), (w1, b1, w2, b2)


if __name__ == "__main__":
    batch = 2
    obs_size = 16
    hidden_dim = 32
    action_size = 4

    key = jax.random.PRNGKey(0)
    kx, kp, kx2 = jax.random.split(key, 3)
    x = jax.random.normal(kx, (batch, obs_size), jnp.float32)
    (w1p, b1p, w2p, b2p), (w1, b1, w2, b2) = init_params(
        kp, obs_size, hidden_dim, action_size)

    # Small-shape forward (single batch tile).
    out = perceptron_forward(x, w1p, b1p, w2p, b2p, action_size)
    out = jax.block_until_ready(out)

    ref = jnp.maximum(x @ w1 + b1, 0.0) @ w2 + b2
    assert out.shape == (batch, action_size)
    assert jnp.allclose(out, ref, atol=1e-5, rtol=1e-5)

    # Exercise the multi-tile batch grid path (grid=(4,), weights resident).
    x2 = jax.random.normal(kx2, (32, obs_size), jnp.float32)
    out2 = jax.block_until_ready(
        perceptron_forward(x2, w1p, b1p, w2p, b2p, action_size, batch_tile=8))
    ref2 = jnp.maximum(x2 @ w1 + b1, 0.0) @ w2 + b2
    assert out2.shape == (32, action_size)
    assert jnp.allclose(out2, ref2, atol=1e-5, rtol=1e-5)

    print("KERNEL_OK")
</pallas_src>

<mosaic_0001>
module attributes {stable_mosaic.version = 11 : i64} {
  func.func @perceptron_kernel(%arg0: i32, %arg1: memref<8x128xf32, #tpu.memory_space<vmem>>, %arg2: memref<128x128xf32, #tpu.memory_space<vmem>>, %arg3: memref<1x128xf32, #tpu.memory_space<vmem>>, %arg4: memref<128x128xf32, #tpu.memory_space<vmem>>, %arg5: memref<1x128xf32, #tpu.memory_space<vmem>>, %arg6: memref<8x128xf32, #tpu.memory_space<vmem>>) attributes {dimension_semantics = [#tpu.dimension_semantics<parallel>], iteration_bounds = array<i64: 1>, scalar_prefetch = 0 : i64, scratch_operands = 0 : i64, tpu.core_type = #tpu.core_type<tc>, window_params = [{transform_indices = @transform_0, window_bounds = array<i64: 8, 128>}, {pipeline_mode = #tpu.pipeline_mode<synchronous>, transform_indices = @transform_1, window_bounds = array<i64: 128, 128>}, {pipeline_mode = #tpu.pipeline_mode<synchronous>, transform_indices = @transform_2, window_bounds = array<i64: 1, 128>}, {pipeline_mode = #tpu.pipeline_mode<synchronous>, transform_indices = @transform_3, window_bounds = array<i64: 128, 128>}, {pipeline_mode = #tpu.pipeline_mode<synchronous>, transform_indices = @transform_4, window_bounds = array<i64: 1, 128>}, {transform_indices = @transform_5, window_bounds = array<i64: 8, 128>}]} {
    %c0 = arith.constant 0 : index
    %c0_0 = arith.constant 0 : index
    %0 = vector.load %arg2[%c0, %c0_0] : memref<128x128xf32, #tpu.memory_space<vmem>>, vector<128x128xf32>
    %c0_1 = arith.constant 0 : index
    %c0_2 = arith.constant 0 : index
    %1 = vector.load %arg4[%c0_1, %c0_2] : memref<128x128xf32, #tpu.memory_space<vmem>>, vector<128x128xf32>
    %c0_3 = arith.constant 0 : index
    %c0_4 = arith.constant 0 : index
    %2 = vector.load %arg1[%c0_3, %c0_4] : memref<8x128xf32, #tpu.memory_space<vmem>>, vector<8x128xf32>
    %cst = arith.constant dense<0.000000e+00> : vector<8x128xf32>
    %3 = tpu.matmul %2, %0, %cst {dimension_numbers = #tpu.dot_dimension_numbers<[1], [0], [0], [1], [0, 0, 1, 1], [], []>} : vector<8x128xf32>, vector<128x128xf32>, vector<8x128xf32> -> vector<8x128xf32>
    %c0_5 = arith.constant 0 : index
    %c0_6 = arith.constant 0 : index
    %4 = vector.load %arg3[%c0_5, %c0_6] : memref<1x128xf32, #tpu.memory_space<vmem>>, vector<1x128xf32>
    %5 = vector.broadcast %4 : vector<1x128xf32> to vector<8x128xf32>
    %6 = arith.addf %3, %5 : vector<8x128xf32>
    %cst_7 = arith.constant 0.000000e+00 : f32
    %7 = vector.broadcast %cst_7 : f32 to vector<8x128xf32>
    %8 = arith.maximumf %6, %7 : vector<8x128xf32>
    %cst_8 = arith.constant dense<0.000000e+00> : vector<8x128xf32>
    %9 = tpu.matmul %8, %1, %cst_8 {dimension_numbers = #tpu.dot_dimension_numbers<[1], [0], [0], [1], [0, 0, 1, 1], [], []>} : vector<8x128xf32>, vector<128x128xf32>, vector<8x128xf32> -> vector<8x128xf32>
    %c0_9 = arith.constant 0 : index
    %c0_10 = arith.constant 0 : index
    %10 = vector.load %arg5[%c0_9, %c0_10] : memref<1x128xf32, #tpu.memory_space<vmem>>, vector<1x128xf32>
    %11 = vector.broadcast %10 : vector<1x128xf32> to vector<8x128xf32>
    %12 = arith.addf %9, %11 : vector<8x128xf32>
    %c0_11 = arith.constant 0 : index
    %c0_12 = arith.constant 0 : index
    %13 = vector.load %arg6[%c0_11, %c0_12] : memref<8x128xf32, #tpu.memory_space<vmem>>, vector<8x128xf32>
    tpu.vector_store %arg6[%c0_11, %c0_12], %12 {strides = array<i32>} : memref<8x128xf32, #tpu.memory_space<vmem>>, vector<8x128xf32>,
    return
  }
  func.func @transform_0(%arg0: i32) -> (i32, i32) {
    %c0_i32 = arith.constant 0 : i32
    %c0_i32_0 = arith.constant 0 : i32
    return %arg0, %c0_i32 : i32, i32
  }
  func.func @transform_1(%arg0: i32) -> (i32, i32) {
    %c0_i32 = arith.constant 0 : i32
    %c0_i32_0 = arith.constant 0 : i32
    %c0_i32_1 = arith.constant 0 : i32
    return %c0_i32, %c0_i32_0 : i32, i32
  }
  func.func @transform_2(%arg0: i32) -> (i32, i32) {
    %c0_i32 = arith.constant 0 : i32
    %c0_i32_0 = arith.constant 0 : i32
    %c0_i32_1 = arith.constant 0 : i32
    return %c0_i32, %c0_i32_0 : i32, i32
  }
  func.func @transform_3(%arg0: i32) -> (i32, i32) {
    %c0_i32 = arith.constant 0 : i32
    %c0_i32_0 = arith.constant 0 : i32
    %c0_i32_1 = arith.constant 0 : i32
    return %c0_i32, %c0_i32_0 : i32, i32
  }
  func.func @transform_4(%arg0: i32) -> (i32, i32) {
    %c0_i32 = arith.constant 0 : i32
    %c0_i32_0 = arith.constant 0 : i32
    %c0_i32_1 = arith.constant 0 : i32
    return %c0_i32, %c0_i32_0 : i32, i32
  }
  func.func @transform_5(%arg0: i32) -> (i32, i32) {
    %c0_i32 = arith.constant 0 : i32
    %c0_i32_0 = arith.constant 0 : i32
    return %arg0, %c0_i32 : i32, i32
  }
}

</mosaic_0001>

<llo_original>
// kernel: tpu_custom_call.1
$region0: #{tpu_custom_call.1}
  #allocation0 [shape = 'u32[]', space=smem, size = 0x4, offset = 0x4, fixed_abs, tag = 'smem constant byte address 0x4 - core index']
  #allocation1 [shape = 'u32[144,128]{1,0:T(1,128)}', space=vmem, size = 0x12000, scoped, tag = 'internal scratch']
  %s0 = inlined_call_operand.hbm [shape: f32[8,128], index: 0, kind: input, shape index: {}]
  %s1 = inlined_call_operand.hbm [shape: f32[128,128], index: 1, kind: input, shape index: {}]
  %s2 = inlined_call_operand.vmem [shape: f32[1,128], index: 2, kind: input, shape index: {}]
  %s3 = inlined_call_operand.hbm [shape: f32[128,128], index: 3, kind: input, shape index: {}]
  %s4 = inlined_call_operand.vmem [shape: f32[1,128], index: 4, kind: input, shape index: {}]
  %s5 = inlined_call_operand.hbm [shape: f32[8,128], index: 5, kind: output, shape index: {}]
  %s6 = sld [smem:[#allocation0]]
  $region42: #{tpu_custom_call.1} parent=0
    _
  %s8 = ssub.s32 1, %s6
  %s9 = scalar_select 0, %s8, %s6
  $region1: #{tpu_custom_call.1} parent=0
    #allocation2 [shape = 'u8[4096]{0}', space=vmem, size = 0x1000, scoped, tag = 'input window, operand 0, single buffered']
    #allocation3 [shape = 's32[1]{0}', space=sflag, size = 0x4, scoped, tag = 'scoped memory for tpu_custom_call.1']
    #allocation4 [shape = 's32[1]{0}', space=sflag, size = 0x4, scoped, tag = 'scoped memory for tpu_custom_call.1']
    #allocation5 [shape = 'u8[65536]{0}', space=vmem, size = 0x10000, scoped, tag = 'input window, operand 1, single buffered']
    #allocation6 [shape = 's32[1]{0}', space=sflag, size = 0x4, scoped, tag = 'scoped memory for tpu_custom_call.1']
    #allocation7 [shape = 'u8[65536]{0}', space=vmem, size = 0x10000, scoped, tag = 'input window, operand 3, single buffered']
    #allocation8 [shape = 'u8[4096]{0}', space=vmem, size = 0x1000, scoped, tag = 'output window, operand 0, single buffered']
    %10 = vsyncpa [#allocation3], 0
    %11 = vsyncpa [#allocation6], 0
    %12 = vsyncpa [#allocation4], 0
    // Predicated region
    $region2: #{tpu_custom_call.1} parent=1 // pred_check
      _
    $region3: #{tpu_custom_call.1} parent=1 // pred_check_branch
      %14 = sbr.rel (0) target = $region5
    $region4: #{tpu_custom_call.1} parent=1 // pred_region
      %s16 = ssub.s32 128, 128
      %17 = vsyncadd [#allocation3], %s16
      %s19 = sshll.u32 [#allocation2], 4
      %s20 = int_to_ptr.vmem [resolvable:$true] %s19
      %22 = dma.hbm_to_vmem [thread:$0]  %s0, 128, %s20, [#allocation3]
    $region5: #{tpu_custom_call.1} parent=1 // pred_fallthru
      _
    // Predicated region
    $region6: #{tpu_custom_call.1} parent=1 // pred_check
      _
    $region7: #{tpu_custom_call.1} parent=1 // pred_check_branch
      %24 = sbr.rel (0) target = $region9
    $region8: #{tpu_custom_call.1} parent=1 // pred_region
      %s26 = ssub.s32 2048, 2048
      %27 = vsyncadd [#allocation6], %s26
      %s28 = sshll.u32 [#allocation5], 4
      %s29 = int_to_ptr.vmem [resolvable:$true] %s28
      %34 = dma.hbm_to_vmem [thread:$0]  %s1, 2048, %s29, [#allocation6], 128, 128, 8
    $region9: #{tpu_custom_call.1} parent=1 // pred_fallthru
      _
    // Predicated region
    $region10: #{tpu_custom_call.1} parent=1 // pred_check
      _
    $region11: #{tpu_custom_call.1} parent=1 // pred_check_branch
      %36 = sbr.rel (0) target = $region13
    $region12: #{tpu_custom_call.1} parent=1 // pred_region
      _
    $region13: #{tpu_custom_call.1} parent=1 // pred_fallthru
      _
    // Predicated region
    $region14: #{tpu_custom_call.1} parent=1 // pred_check
      _
    $region15: #{tpu_custom_call.1} parent=1 // pred_check_branch
      %38 = sbr.rel (0) target = $region17
    $region16: #{tpu_custom_call.1} parent=1 // pred_region
      %s40 = ssub.s32 2048, 2048
      %41 = vsyncadd [#allocation6], %s40
      %s42 = sshll.u32 [#allocation7], 4
      %s43 = int_to_ptr.vmem [resolvable:$true] %s42
      %48 = dma.hbm_to_vmem [thread:$0]  %s3, 2048, %s43, [#allocation6], 128, 128, 8
    $region17: #{tpu_custom_call.1} parent=1 // pred_fallthru
      _
    // Predicated region
    $region18: #{tpu_custom_call.1} parent=1 // pred_check
      _
    $region19: #{tpu_custom_call.1} parent=1 // pred_check_branch
      %50 = sbr.rel (0) target = $region21
    $region20: #{tpu_custom_call.1} parent=1 // pred_region
      _
    $region21: #{tpu_custom_call.1} parent=1 // pred_fallthru
      _
    // Predicated region
    $region22: #{tpu_custom_call.1} parent=1 // pred_check
      _
    $region23: #{tpu_custom_call.1} parent=1 // pred_check_branch
      %52 = sbr.rel (0) target = $region25
    $region24: #{tpu_custom_call.1} parent=1 // pred_region
      %53 = dma.done [#allocation3], 128
    $region25: #{tpu_custom_call.1} parent=1 // pred_fallthru
      _
    // Predicated region
    $region26: #{tpu_custom_call.1} parent=1 // pred_check
      _
    $region27: #{tpu_custom_call.1} parent=1 // pred_check_branch
      %55 = sbr.rel (0) target = $region29
    $region28: #{tpu_custom_call.1} parent=1 // pred_region
      %56 = dma.done [#allocation6], 2048
    $region29: #{tpu_custom_call.1} parent=1 // pred_fallthru
      _
    // Predicated region
    $region30: #{tpu_custom_call.1} parent=1 // pred_check
      _
    $region31: #{tpu_custom_call.1} parent=1 // pred_check_branch
      %58 = sbr.rel (0) target = $region33
    $region32: #{tpu_custom_call.1} parent=1 // pred_region
      %59 = dma.done [#allocation6], 2048
    $region33: #{tpu_custom_call.1} parent=1 // pred_fallthru
      _
    %v60 = vld [vmem:[#allocation5] sm:$0xff]
    %v61 = vld [vmem:[#allocation5 + $0x8] sm:$0xff]
    %v62 = vld [vmem:[#allocation5 + $0x10] sm:$0xff]
    %v63 = vld [vmem:[#allocation5 + $0x18] sm:$0xff]
    %v64 = vld [vmem:[#allocation5 + $0x20] sm:$0xff]
    %v65 = vld [vmem:[#allocation5 + $0x28] sm:$0xff]
    %v66 = vld [vmem:[#allocation5 + $0x30] sm:$0xff]
    %v67 = vld [vmem:[#allocation5 + $0x38] sm:$0xff]
    %v68 = vld [vmem:[#allocation5 + $0x40] sm:$0xff]
    %v69 = vld [vmem:[#allocation5 + $0x48] sm:$0xff]
    %v70 = vld [vmem:[#allocation5 + $0x50] sm:$0xff]
    %v71 = vld [vmem:[#allocation5 + $0x58] sm:$0xff]
    %v72 = vld [vmem:[#allocation5 + $0x60] sm:$0xff]
    %v73 = vld [vmem:[#allocation5 + $0x68] sm:$0xff]
    %v74 = vld [vmem:[#allocation5 + $0x70] sm:$0xff]
    %v75 = vld [vmem:[#allocation5 + $0x78] sm:$0xff]
    %v76 = vld [vmem:[#allocation7] sm:$0xff]
    %v77 = vld [vmem:[#allocation7 + $0x8] sm:$0xff]
    %v78 = vld [vmem:[#allocation7 + $0x10] sm:$0xff]
    %v79 = vld [vmem:[#allocation7 + $0x18] sm:$0xff]
    %v80 = vld [vmem:[#allocation7 + $0x20] sm:$0xff]
    %v81 = vld [vmem:[#allocation7 + $0x28] sm:$0xff]
    %v82 = vld [vmem:[#allocation7 + $0x30] sm:$0xff]
    %v83 = vld [vmem:[#allocation7 + $0x38] sm:$0xff]
    %v84 = vld [vmem:[#allocation7 + $0x40] sm:$0xff]
    %v85 = vld [vmem:[#allocation7 + $0x48] sm:$0xff]
    %v86 = vld [vmem:[#allocation7 + $0x50] sm:$0xff]
    %v87 = vld [vmem:[#allocation7 + $0x58] sm:$0xff]
    %v88 = vld [vmem:[#allocation7 + $0x60] sm:$0xff]
    %v89 = vld [vmem:[#allocation7 + $0x68] sm:$0xff]
    %v90 = vld [vmem:[#allocation7 + $0x70] sm:$0xff]
    %v91 = vld [vmem:[#allocation7 + $0x78] sm:$0xff]
    %v92 = vld [vmem:[#allocation2] sm:$0xff]
    %v93 = vld [vmem:[%s2] sm:$0x1]
    %v95 = vlaneseq
    %v96 = vshrl.u32 %v95, 7
    %v97 = vsub.s32 0, %v96
    %v98 = vrot.slane %v93, %v97
    %100 = vmatprep.subr.mxu0 0.0
    %101 = vmatpush1.msra.mxu0 %v60
    %102 = vmatprep.subr.mxu0 0.0
    %103 = vmatpush1.msra.mxu0 %v61
    %104 = vmatprep.subr.mxu0 0.0
    %105 = vmatpush1.msra.mxu0 %v62
    %106 = vmatprep.subr.mxu0 0.0
    %107 = vmatpush1.msra.mxu0 %v63
    %108 = vmatprep.subr.mxu0 0.0
    %109 = vmatpush1.msra.mxu0 %v64
    %110 = vmatprep.subr.mxu0 0.0
    %111 = vmatpush1.msra.mxu0 %v65
    %112 = vmatprep.subr.mxu0 0.0
    %113 = vmatpush1.msra.mxu0 %v66
    %114 = vmatprep.subr.mxu0 0.0
    %115 = vmatpush1.msra.mxu0 %v67
    %116 = vmatprep.subr.mxu0 0.0
    %117 = vmatpush1.msra.mxu0 %v68
    %118 = vmatprep.subr.mxu0 0.0
    %119 = vmatpush1.msra.mxu0 %v69
    %120 = vmatprep.subr.mxu0 0.0
    %121 = vmatpush1.msra.mxu0 %v70
    %122 = vmatprep.subr.mxu0 0.0
    %123 = vmatpush1.msra.mxu0 %v71
    %124 = vmatprep.subr.mxu0 0.0
    %125 = vmatpush1.msra.mxu0 %v72
    %126 = vmatprep.subr.mxu0 0.0
    %127 = vmatpush1.msra.mxu0 %v73
    %128 = vmatprep.subr.mxu0 0.0
    %129 = vmatpush1.msra.mxu0 %v74
    %130 = vmatprep.subr.mxu0 0.0
    %131 = vmatpush1.msra.mxu0 %v75
    %132 = vmatprep.subr.mxu0 0.0
    %133 = vmatpush1.msra.mxu0 0.0
    %134 = vmatprep.subr.mxu0 0.0
    %135 = vmatpush1.msra.mxu0 0.0
    %136 = vmatprep.subr.mxu0 0.0
    %137 = vmatpush1.msra.mxu0 0.0
    %138 = vmatprep.subr.mxu0 0.0
    %139 = vmatpush1.msra.mxu0 0.0
    %140 = vmatprep.subr.mxu0 0.0
    %141 = vmatpush1.msra.mxu0 0.0
    %142 = vmatprep.subr.mxu0 0.0
    %143 = vmatpush1.msra.mxu0 0.0
    %144 = vmatprep.subr.mxu0 0.0
    %145 = vmatpush1.msra.mxu0 0.0
    %146 = vmatprep.subr.mxu0 0.0
    %147 = vmatpush1.msra.mxu0 0.0
    %148 = vmatprep.subr.mxu0 0.0
    %149 = vmatpush1.msra.mxu0 0.0
    %150 = vmatprep.subr.mxu0 0.0
    %151 = vmatpush1.msra.mxu0 0.0
    %152 = vmatprep.subr.mxu0 0.0
    %153 = vmatpush1.msra.mxu0 0.0
    %154 = vmatprep.subr.mxu0 0.0
    %155 = vmatpush1.msra.mxu0 0.0
    %156 = vmatprep.subr.mxu0 0.0
    %157 = vmatpush1.msra.mxu0 0.0
    %158 = vmatprep.subr.mxu0 0.0
    %159 = vmatpush1.msra.mxu0 0.0
    %160 = vmatprep.subr.mxu0 0.0
    %161 = vmatpush1.msra.mxu0 0.0
    %162 = vmatprep.subr.mxu0 0.0
    %163 = vmatpush1.msra.mxu0 0.0
    %164 = vmatprep.mubr.f32.mxu0 0.0
    %165 = vmatmul.mubr.f32.gmra.mrb[0].mxu0 %v92
    %v166 = vpop.f32.mrb[0].mxu0
    %v167 = vadd.f32 %v98, %v166
    %v168 = vpop.f32.mrb[0].mxu0
    %169 = vdwg.mxu0
    %v170 = vmax.f32 %v167, 0.0
    %v171 = vld [vmem:[%s4] sm:$0x1]
    %v173 = vlaneseq
    %v174 = vshrl.u32 %v173, 7
    %v175 = vsub.s32 0, %v174
    %v176 = vrot.slane %v171, %v175
    %178 = vmatprep.subr.mxu0 0.0
    %179 = vmatpush1.msra.mxu0 %v76
    %180 = vmatprep.subr.mxu0 0.0
    %181 = vmatpush1.msra.mxu0 %v77
    %182 = vmatprep.subr.mxu0 0.0
    %183 = vmatpush1.msra.mxu0 %v78
    %184 = vmatprep.subr.mxu0 0.0
    %185 = vmatpush1.msra.mxu0 %v79
    %186 = vmatprep.subr.mxu0 0.0
    %187 = vmatpush1.msra.mxu0 %v80
    %188 = vmatprep.subr.mxu0 0.0
    %189 = vmatpush1.msra.mxu0 %v81
    %190 = vmatprep.subr.mxu0 0.0
    %191 = vmatpush1.msra.mxu0 %v82
    %192 = vmatprep.subr.mxu0 0.0
    %193 = vmatpush1.msra.mxu0 %v83
    %194 = vmatprep.subr.mxu0 0.0
    %195 = vmatpush1.msra.mxu0 %v84
    %196 = vmatprep.subr.mxu0 0.0
    %197 = vmatpush1.msra.mxu0 %v85
    %198 = vmatprep.subr.mxu0 0.0
    %199 = vmatpush1.msra.mxu0 %v86
    %200 = vmatprep.subr.mxu0 0.0
    %201 = vmatpush1.msra.mxu0 %v87
    %202 = vmatprep.subr.mxu0 0.0
    %203 = vmatpush1.msra.mxu0 %v88
    %204 = vmatprep.subr.mxu0 0.0
    %205 = vmatpush1.msra.mxu0 %v89
    %206 = vmatprep.subr.mxu0 0.0
    %207 = vmatpush1.msra.mxu0 %v90
    %208 = vmatprep.subr.mxu0 0.0
    %209 = vmatpush1.msra.mxu0 %v91
    %210 = vmatprep.subr.mxu0 0.0
    %211 = vmatpush1.msra.mxu0 0.0
    %212 = vmatprep.subr.mxu0 0.0
    %213 = vmatpush1.msra.mxu0 0.0
    %214 = vmatprep.subr.mxu0 0.0
    %215 = vmatpush1.msra.mxu0 0.0
    %216 = vmatprep.subr.mxu0 0.0
    %217 = vmatpush1.msra.mxu0 0.0
    %218 = vmatprep.subr.mxu0 0.0
    %219 = vmatpush1.msra.mxu0 0.0
    %220 = vmatprep.subr.mxu0 0.0
    %221 = vmatpush1.msra.mxu0 0.0
    %222 = vmatprep.subr.mxu0 0.0
    %223 = vmatpush1.msra.mxu0 0.0
    %224 = vmatprep.subr.mxu0 0.0
    %225 = vmatpush1.msra.mxu0 0.0
    %226 = vmatprep.subr.mxu0 0.0
    %227 = vmatpush1.msra.mxu0 0.0
    %228 = vmatprep.subr.mxu0 0.0
    %229 = vmatpush1.msra.mxu0 0.0
    %230 = vmatprep.subr.mxu0 0.0
    %231 = vmatpush1.msra.mxu0 0.0
    %232 = vmatprep.subr.mxu0 0.0
    %233 = vmatpush1.msra.mxu0 0.0
    %234 = vmatprep.subr.mxu0 0.0
    %235 = vmatpush1.msra.mxu0 0.0
    %236 = vmatprep.subr.mxu0 0.0
    %237 = vmatpush1.msra.mxu0 0.0
    %238 = vmatprep.subr.mxu0 0.0
    %239 = vmatpush1.msra.mxu0 0.0
    %240 = vmatprep.subr.mxu0 0.0
    %241 = vmatpush1.msra.mxu0 0.0
    %242 = vmatprep.mubr.f32.mxu0 0.0
    %243 = vmatmul.mubr.f32.gmra.mrb[0].mxu0 %v170
    %v244 = vpop.f32.mrb[0].mxu0
    %v245 = vadd.f32 %v176, %v244
    %v246 = vpop.f32.mrb[0].mxu0
    %247 = vdwg.mxu0
    %248 = vst [vmem:[#allocation8] sm:$0xff] %v245
    // Predicated region
    $region34: #{tpu_custom_call.1} parent=1 // pred_check
      _
    $region35: #{tpu_custom_call.1} parent=1 // pred_check_branch
      %250 = sbr.rel (0) target = $region37
    $region36: #{tpu_custom_call.1} parent=1 // pred_region
      %s252 = ssub.s32 128, 128
      %253 = vsyncadd [#allocation4], %s252
      %s255 = sshll.u32 [#allocation8], 4
      %s256 = int_to_ptr.vmem [resolvable:$true] %s255
      %258 = dma.vmem_to_hbm [thread:$0]  %s256, 128, %s5, [#allocation4]
    $region37: #{tpu_custom_call.1} parent=1 // pred_fallthru
      _
    // Predicated region
    $region38: #{tpu_custom_call.1} parent=1 // pred_check
      _
    $region39: #{tpu_custom_call.1} parent=1 // pred_check_branch
      %260 = sbr.rel (0) target = $region41
    $region40: #{tpu_custom_call.1} parent=1 // pred_region
      %261 = dma.done [#allocation4], 128
    $region41: #{tpu_custom_call.1} parent=1 // pred_fallthru
      _
    %262 = vsyncpa [#allocation3], 1
    %263 = vsyncpa [#allocation6], 1
    %264 = vsyncpa [#allocation4], 1

</llo_original>
